<compile_context>
chip_gen: v6e
topology: v6e:2x2x1
jax: 0.10.0
libtpu: 0.0.40
codegen_flags: <defaults>
</compile_context>

<pallas_src>
import jax
import jax.numpy as jnp
from jax.experimental import pallas as pl
from jax.experimental.pallas import tpu as pltpu


def _layer_scale_kernel(x_ref, g_ref, o_ref):
    # x_ref: (1, TR, TC), g_ref: (TR, 1) -> per-channel broadcast, pure VPU multiply.
    o_ref[...] = x_ref[...] * g_ref[...][None, :, :]


def _cdiv(a, b):
    return -(-a // b)


def _round_up(a, b):
    return _cdiv(a, b) * b


def _sublane_unit(dtype):
    # f32 -> 8, bf16/f16 -> 16, int8/fp8 -> 32 (sub-32-bit dtypes pack along sublanes).
    bits = jnp.dtype(dtype).itemsize * 8
    return max(8, 256 // bits)


_BLOCK_BUDGET = 2 * 1024 * 1024   # bytes per x block (in + out double-buffered ~8 MiB)
_MAX_TR = 1024                    # bounds gamma/lane padding for tiny spatial dims


def _choose_tiles(C, M, dtype):
    itemsize = jnp.dtype(dtype).itemsize
    unit_r = _sublane_unit(dtype)
    row_bytes = M * itemsize
    if unit_r * row_bytes <= _BLOCK_BUDGET:
        # Lane-dense full-row blocks: one long contiguous DMA run per row group.
        tc = M
        cand = min(_MAX_TR, (_BLOCK_BUDGET // row_bytes) // unit_r * unit_r)
        tr = C if cand >= C else cand            # < C => multiple of unit_r; else full dim
    else:
        # Even one sublane group of full rows exceeds the budget (huge H*W): split lanes.
        tr = C if C <= unit_r else unit_r
        tc = (_BLOCK_BUDGET // (tr * itemsize)) // 128 * 128
        tc = max(128, min(tc, M))
    return tr, tc, unit_r


@jax.jit
def layer_scale_2d(x_nchw, gamma):
    """y = x * gamma with gamma of shape (1, C, 1, 1) (LayerScale2D.forward, out-of-place)."""
    B, C, H, W = x_nchw.shape
    M = H * W

    x3 = x_nchw.reshape(B, C, M)                  # contiguous view, no data movement
    # NOTE: gamma is cast to the activation dtype before the multiply; for bf16 x with
    # f32 gamma this differs negligibly from an f32-precision reference (intentional).
    scale = gamma.reshape(C, 1).astype(x3.dtype)

    tr, tc, unit_r = _choose_tiles(C, M, x3.dtype)

    # v7x has 2 TensorCores: if the whole tensor fits a single block, split it so a
    # "parallel" axis has >= 2 steps (no-op on v5e/v6e and for any multi-block shape).
    if B * _cdiv(C, tr) * _cdiv(M, tc) < 2:
        if C > unit_r:
            tr = _round_up(_cdiv(C, 2), unit_r)
        elif M > 128:
            tc = _round_up(_cdiv(M, 2), 128)

    grid = (B, _cdiv(C, tr), _cdiv(M, tc))        # cdiv + masked edge blocks

    out = pl.pallas_call(
        _layer_scale_kernel,
        out_shape=jax.ShapeDtypeStruct((B, C, M), x3.dtype),
        grid=grid,
        in_specs=[
            pl.BlockSpec((1, tr, tc), lambda b, c, m: (b, c, m)),
            pl.BlockSpec((tr, 1), lambda b, c, m: (c, 0)),
        ],
        out_specs=pl.BlockSpec((1, tr, tc), lambda b, c, m: (b, c, m)),
        compiler_params=pltpu.CompilerParams(
            dimension_semantics=("parallel", "parallel", "parallel"),
            vmem_limit_bytes=32 * 1024 * 1024),
    )(x3, scale)
    return out.reshape(B, C, H, W)


if __name__ == "__main__":
    key = jax.random.PRNGKey(0)
    kx, kg = jax.random.split(key)

    B, C, H, W = 2, 4, 16, 16
    x = jax.random.normal(kx, (B, C, H, W), jnp.float32)

    # gamma is a learnable parameter (init 1e-5 * ones); perturb it so a per-channel
    # indexing bug would be visible in the check below.
    gamma = 1e-5 * jnp.ones((1, C, 1, 1), jnp.float32) \
        + 0.01 * jax.random.normal(kg, (1, C, 1, 1), jnp.float32)

    out = jax.block_until_ready(layer_scale_2d(x, gamma))

    ref = x * gamma
    assert out.shape == (B, C, H, W), out.shape
    assert bool(jnp.all(jnp.isfinite(out)))
    assert jnp.allclose(out, ref, atol=1e-6, rtol=1e-6), \
        float(jnp.max(jnp.abs(out - ref)))
    print("KERNEL_OK")
</pallas_src>

<mosaic_0001>
module attributes {stable_mosaic.version = 11 : i64} {
  func.func @_layer_scale_kernel(%arg0: i32, %arg1: i32, %arg2: i32, %arg3: memref<1x4x256xf32, #tpu.memory_space<vmem>>, %arg4: memref<4x1xf32, #tpu.memory_space<vmem>>, %arg5: memref<1x4x256xf32, #tpu.memory_space<vmem>>) attributes {dimension_semantics = [#tpu.dimension_semantics<parallel>, #tpu.dimension_semantics<parallel>, #tpu.dimension_semantics<parallel>], iteration_bounds = array<i64: 2, 1, 1>, scalar_prefetch = 0 : i64, scratch_operands = 0 : i64, tpu.core_type = #tpu.core_type<tc>, window_params = [{transform_indices = @transform_0, window_bounds = array<i64: 1, 4, 256>}, {transform_indices = @transform_1, window_bounds = array<i64: 4, 1>}, {transform_indices = @transform_2, window_bounds = array<i64: 1, 4, 256>}]} {
    %c0 = arith.constant 0 : index
    %c0_0 = arith.constant 0 : index
    %c0_1 = arith.constant 0 : index
    %0 = vector.load %arg3[%c0, %c0_0, %c0_1] : memref<1x4x256xf32, #tpu.memory_space<vmem>>, vector<1x4x256xf32>
    %c0_2 = arith.constant 0 : index
    %c0_3 = arith.constant 0 : index
    %1 = vector.load %arg4[%c0_2, %c0_3] : memref<4x1xf32, #tpu.memory_space<vmem>>, vector<4x1xf32>
    %2 = vector.shape_cast %1 : vector<4x1xf32> to vector<1x4x1xf32>
    %3 = vector.broadcast %2 : vector<1x4x1xf32> to vector<1x4x256xf32>
    %4 = arith.mulf %0, %3 : vector<1x4x256xf32>
    %c0_4 = arith.constant 0 : index
    %c0_5 = arith.constant 0 : index
    %c0_6 = arith.constant 0 : index
    %5 = vector.load %arg5[%c0_4, %c0_5, %c0_6] : memref<1x4x256xf32, #tpu.memory_space<vmem>>, vector<1x4x256xf32>
    tpu.vector_store %arg5[%c0_4, %c0_5, %c0_6], %4 {strides = array<i32>} : memref<1x4x256xf32, #tpu.memory_space<vmem>>, vector<1x4x256xf32>,
    return
  }
  func.func @transform_0(%arg0: i32, %arg1: i32, %arg2: i32) -> (i32, i32, i32) {
    %c0_i32 = arith.constant 0 : i32
    return %arg0, %arg1, %arg2 : i32, i32, i32
  }
  func.func @transform_1(%arg0: i32, %arg1: i32, %arg2: i32) -> (i32, i32) {
    %c0_i32 = arith.constant 0 : i32
    %c0_i32_0 = arith.constant 0 : i32
    return %arg1, %c0_i32 : i32, i32
  }
  func.func @transform_2(%arg0: i32, %arg1: i32, %arg2: i32) -> (i32, i32, i32) {
    %c0_i32 = arith.constant 0 : i32
    return %arg0, %arg1, %arg2 : i32, i32, i32
  }
}

</mosaic_0001>

<llo_original>
// kernel: layer_scale_2d.1
$region0: #{layer_scale_2d.1}
  #allocation0 [shape = 'u32[]', space=smem, size = 0x4, offset = 0x4, fixed_abs, tag = 'smem constant byte address 0x4 - core index']
  #allocation1 [shape = 'u32[144,128]{1,0:T(1,128)}', space=vmem, size = 0x12000, scoped, tag = 'internal scratch']
  %s0 = inlined_call_operand.vmem [shape: f32[2,4,256], index: 0, kind: input, shape index: {}]
  %s1 = inlined_call_operand.vmem [shape: f32[4,1], index: 1, kind: input, shape index: {}]
  %s2 = inlined_call_operand.vmem [shape: f32[2,4,256], index: 2, kind: output, shape index: {}]
  %s3 = sld [smem:[#allocation0]]
  $region41: #{layer_scale_2d.1} parent=0
    _
  %s5 = ssub.s32 1, %s3
  %s6 = scalar_select 0, %s5, %s3
  loop: start=0, step=1, limit=4
  $region2: #{layer_scale_2d.1} parent=0 // loop_pre_header
    _
  $region3: #{layer_scale_2d.1} parent=0 // loop_header
    %s8 = sphi 0, %s12
    %p9 = scmp.ge.s32.totalorder %s8, 4
    %s15 = sphi 0, %s34
    %s16 = sphi 0, %s30
    %s17 = sphi 0, %s26
    %s18 = sphi 0, %s15
    %s19 = sphi 0, %s16
    %s20 = sphi 0, %s17
    %s21 = sphi 0, %s18
    %s22 = sphi 0, %s19
    %s23 = sphi 0, %s20
    %s41 = sphi 0, %s43
    %s44 = sphi 0, %s41
    %s45 = sphi 0, %s44
    %s61 = sphi 0, %s45
    %s67 = sphi 0, %s69
    %s70 = sphi 0, %s67
    %s71 = sphi 0, %s70
    %s87 = sphi 0, %s71
    %s97 = sphi 0, %s99
    %s100 = sphi 0, %s97
    %s101 = sphi 0, %s100
    %s117 = sphi 0, %s101
  $region4: #{layer_scale_2d.1} parent=0 // loop_header_branch
    %11 = sbr.rel (%p9) target = $region8
  $region5: #{layer_scale_2d.1} parent=0 // loop_body
    %s13 = ssub.s32 %s8, 1
    %s14 = ssub.s32 %s8, 2
    %s24 = sadd.s32 1, %s17
    %p25 = scmp.ge.s32.totalorder %s24, 1
    %s26 = scalar_select %p25, 0, %s24
    %s27 = sadd.s32 1, %s16
    %s28 = scalar_select %p25, %s27, %s16
    %p29 = scmp.ge.s32.totalorder %s28, 1
    %s30 = scalar_select %p29, 0, %s28
    %s31 = sadd.s32 1, %s15
    %s32 = scalar_select %p29, %s31, %s15
    %p33 = scmp.ge.s32.totalorder %s32, 2
    %s34 = scalar_select %p33, 0, %s32
    %s35 = ssub.s32 %s15, %s34
    %s36 = ssub.s32 %s16, %s30
    %s37 = sor.u32 %s35, %s36
    %s38 = ssub.s32 %s17, %s26
    %s39 = sor.u32 %s37, %s38
    %p40 = scmp.eq.s32.totalorder %s39, 0
    %s42 = sadd.s32 %s41, 1
    %s43 = scalar_select %p40, %s41, %s42
    %p46 = pneg %p40
    %p47 = scmp.eq.s32.totalorder %s8, 1
    %p48 = por %p46, %p47
    %p49 = scmp.ne.s32.totalorder %s41, %s44
    %p50 = scmp.eq.s32.totalorder %s8, 0
    %p51 = por %p49, %p50
    %p52 = scmp.ne.s32.totalorder %s41, %s44
    %p53 = scmp.eq.s32.totalorder %s13, 1
    %p54 = por %p52, %p53
    %p55 = scmp.ne.s32.totalorder %s44, %s45
    %p56 = scmp.eq.s32.totalorder %s13, 0
    %p57 = por %p55, %p56
    %p58 = scmp.ne.s32.totalorder %s44, %s45
    %p59 = scmp.eq.s32.totalorder %s14, 1
    %p60 = por %p58, %p59
    %p62 = scmp.ne.s32.totalorder %s45, %s61
    %p63 = scmp.eq.s32.totalorder %s14, 0
    %p64 = por %p62, %p63
    %s65 = ssub.s32 %s16, %s30
    %p66 = scmp.eq.s32.totalorder %s65, 0
    %s68 = sadd.s32 %s67, 1
    %s69 = scalar_select %p66, %s67, %s68
    %p72 = pneg %p66
    %p73 = scmp.eq.s32.totalorder %s8, 1
    %p74 = por %p72, %p73
    %p75 = scmp.ne.s32.totalorder %s67, %s70
    %p76 = scmp.eq.s32.totalorder %s8, 0
    %p77 = por %p75, %p76
    %p78 = scmp.ne.s32.totalorder %s67, %s70
    %p79 = scmp.eq.s32.totalorder %s13, 1
    %p80 = por %p78, %p79
    %p81 = scmp.ne.s32.totalorder %s70, %s71
    %p82 = scmp.eq.s32.totalorder %s13, 0
    %p83 = por %p81, %p82
    %p84 = scmp.ne.s32.totalorder %s70, %s71
    %p85 = scmp.eq.s32.totalorder %s14, 1
    %p86 = por %p84, %p85
    %p88 = scmp.ne.s32.totalorder %s71, %s87
    %p89 = scmp.eq.s32.totalorder %s14, 0
    %p90 = por %p88, %p89
    %s91 = ssub.s32 %s15, %s34
    %s92 = ssub.s32 %s16, %s30
    %s93 = sor.u32 %s91, %s92
    %s94 = ssub.s32 %s17, %s26
    %s95 = sor.u32 %s93, %s94
    %p96 = scmp.eq.s32.totalorder %s95, 0
    %s98 = sadd.s32 %s97, 1
    %s99 = scalar_select %p96, %s97, %s98
    %p102 = pneg %p96
    %p103 = scmp.eq.s32.totalorder %s8, 1
    %p104 = por %p102, %p103
    %p105 = scmp.ne.s32.totalorder %s97, %s100
    %p106 = scmp.eq.s32.totalorder %s8, 0
    %p107 = por %p105, %p106
    %p108 = scmp.ne.s32.totalorder %s97, %s100
    %p109 = scmp.eq.s32.totalorder %s13, 1
    %p110 = por %p108, %p109
    %p111 = scmp.ne.s32.totalorder %s100, %s101
    %p112 = scmp.eq.s32.totalorder %s13, 0
    %p113 = por %p111, %p112
    %p114 = scmp.ne.s32.totalorder %s100, %s101
    %p115 = scmp.eq.s32.totalorder %s14, 1
    %p116 = por %p114, %p115
    %p118 = scmp.ne.s32.totalorder %s101, %s117
    %p119 = scmp.eq.s32.totalorder %s14, 0
    %p120 = por %p118, %p119
    %p121 = scmp.le.s32.totalorder 1, %s8
    %p122 = scmp.lt.s32.totalorder %s8, 3
    %p123 = pnand %p121, %p122
    %p124 = pneg %p123
    // Predicated region
    $region9: #{layer_scale_2d.1} parent=5 // pred_check
      _
    $region10: #{layer_scale_2d.1} parent=5 // pred_check_branch
      %126 = sbr.rel (%p123) target = $region12
    $region11: #{layer_scale_2d.1} parent=5 // pred_region
      %s127 = ssub.s32 %s8, 1
      // Predicated region
      $region13: #{layer_scale_2d.1} parent=11 // pred_check
        %p128 = pneg %p83
      $region14: #{layer_scale_2d.1} parent=11 // pred_check_branch
        %130 = sbr.rel (%p128) target = $region16
      $region15: #{layer_scale_2d.1} parent=11 // pred_region
        %p131 = scmp.lt.s32.totalorder %s19, 0
        %s132 = scalar_select %p131, %s19, 0
        %s133 = smul.addr %s132, 4
        %s134 = scalar_lea.vmem %s1, %s133
      $region16: #{layer_scale_2d.1} parent=11 // pred_fallthru
        _
    $region12: #{layer_scale_2d.1} parent=5 // pred_fallthru
      _
    %p135 = scmp.lt.s32.totalorder %s8, 2
    // Predicated region
    $region17: #{layer_scale_2d.1} parent=5 // pred_check
      %p136 = pneg %p135
    $region18: #{layer_scale_2d.1} parent=5 // pred_check_branch
      %138 = sbr.rel (%p136) target = $region20
    $region19: #{layer_scale_2d.1} parent=5 // pred_region
      // Predicated region
      $region21: #{layer_scale_2d.1} parent=19 // pred_check
        %p139 = pneg %p51
      $region22: #{layer_scale_2d.1} parent=19 // pred_check_branch
        %141 = sbr.rel (%p139) target = $region24
      $region23: #{layer_scale_2d.1} parent=19 // pred_region
        %s142 = smul.u32 2, %s17
        %p143 = scmp.lt.s32.totalorder %s15, 1
        %s144 = scalar_select %p143, %s15, 1
        %p145 = scmp.lt.s32.totalorder %s16, 0
        %s146 = scalar_select %p145, %s16, 0
        %p147 = scmp.lt.s32.totalorder %s142, 1
        %s148 = scalar_select %p147, %s142, 1
        %s149 = smul.addr %s146, 2
        %s150 = sadd.s32 %s148, %s149
        %s151 = smul.addr %s144, 2
        %s152 = sadd.s32 %s150, %s151
        %s153 = smul.addr %s152, 4
        %s154 = scalar_lea.vmem %s0, %s153
        %s155 = smul.u32 2, %s17
      $region24: #{layer_scale_2d.1} parent=19 // pred_fallthru
        _
    $region20: #{layer_scale_2d.1} parent=5 // pred_fallthru
      _
    %p156 = scmp.le.s32.totalorder 1, %s8
    %p157 = scmp.lt.s32.totalorder %s8, 3
    %p158 = pnand %p156, %p157
    %p159 = pneg %p158
    // Predicated region
    $region25: #{layer_scale_2d.1} parent=5 // pred_check
      _
    $region26: #{layer_scale_2d.1} parent=5 // pred_check_branch
      %161 = sbr.rel (%p158) target = $region28
    $region27: #{layer_scale_2d.1} parent=5 // pred_region
      %s162 = ssub.s32 %s8, 1
      %s163 = smul.u32 2, %s20
      %p164 = scmp.lt.s32.totalorder %s18, 1
      %s165 = scalar_select %p164, %s18, 1
      %p166 = scmp.lt.s32.totalorder %s19, 0
      %s167 = scalar_select %p166, %s19, 0
      %p168 = scmp.lt.s32.totalorder %s163, 1
      %s169 = scalar_select %p168, %s163, 1
      %s170 = smul.addr %s167, 2
      %s171 = sadd.s32 %s169, %s170
      %s172 = smul.addr %s165, 2
      %s173 = sadd.s32 %s171, %s172
      %s174 = smul.addr %s173, 4
      %s175 = scalar_lea.vmem %s0, %s174
      %p176 = pneg %p57
      %p177 = pneg %p54
      %p178 = scmp.lt.s32.totalorder %s19, 0
      %s179 = scalar_select %p178, %s19, 0
      %s180 = smul.addr %s179, 4
      %s181 = scalar_lea.vmem %s1, %s180
      %p182 = pneg %p83
      %p183 = pneg %p80
      %p184 = pneg %p113
      %p185 = pneg %p110
      %s186 = smul.u32 2, %s20
      %p187 = scmp.lt.s32.totalorder %s18, 1
      %s188 = scalar_select %p187, %s18, 1
      %p189 = scmp.lt.s32.totalorder %s19, 0
      %s190 = scalar_select %p189, %s19, 0
      %p191 = scmp.lt.s32.totalorder %s186, 1
      %s192 = scalar_select %p191, %s186, 1
      %s193 = smul.addr %s190, 2
      %s194 = sadd.s32 %s192, %s193
      %s195 = smul.addr %s188, 2
      %s196 = sadd.s32 %s194, %s195
      %s197 = smul.addr %s196, 4
      %s198 = scalar_lea.vmem %s2, %s197
      %s199 = smul.u32 2, %s20
      %p200 = scmp.lt.s32.totalorder %s18, 1
      %s201 = scalar_select %p200, %s18, 1
      %p202 = scmp.lt.s32.totalorder %s19, 0
      %s203 = scalar_select %p202, %s19, 0
      %p204 = scmp.lt.s32.totalorder %s199, 1
      %s205 = scalar_select %p204, %s199, 1
      %s206 = smul.addr %s203, 2
      %s207 = sadd.s32 %s205, %s206
      %s208 = smul.addr %s201, 2
      %s209 = sadd.s32 %s207, %s208
      %s210 = smul.addr %s209, 4
      %s211 = scalar_lea.vmem %s0, %s210
      %s212 = smul.u32 2, %s20
      %p213 = scmp.lt.s32.totalorder %s19, 0
      %s214 = scalar_select %p213, %s19, 0
      %s215 = smul.addr %s214, 4
      %s216 = scalar_lea.vmem %s1, %s215
      %s217 = smul.u32 2, %s20
      %p218 = scmp.lt.s32.totalorder %s18, 1
      %s219 = scalar_select %p218, %s18, 1
      %p220 = scmp.lt.s32.totalorder %s19, 0
      %s221 = scalar_select %p220, %s19, 0
      %p222 = scmp.lt.s32.totalorder %s217, 1
      %s223 = scalar_select %p222, %s217, 1
      %s224 = smul.addr %s221, 2
      %s225 = sadd.s32 %s223, %s224
      %s226 = smul.addr %s219, 2
      %s227 = sadd.s32 %s225, %s226
      %s228 = smul.addr %s227, 4
      %s229 = scalar_lea.vmem %s2, %s228
      %s230 = smul.u32 2, %s20
      %v231 = vld [vmem:[%s211] sm:$0xff]
      %v232 = vld [vmem:[%s216] sm:$0xf]
      %234 = vset.pattern.permute.xlu0 0
      %235 = vperm.xlu0 %234, %v232
      %v236 = vpop.permute.xlu0 %235
      %v238 = vunpack.c.l.s4 839922192
      %v239 = vunpack.c.0.s8 %v238
      %v240 = vlaneseq
      %v241 = vshrl.u32 %v240, 7
      %v242 = vsub.s32 %v239, %v241
      %v243 = vrot.slane %v236, %v242
      %v245 = vmul.f32 %v231, %v243
      %246 = vst [vmem:[%s229] sm:$0xff] %v245
      %s247 = smul.u32 2, %s20
      %p248 = scmp.lt.s32.totalorder %s18, 1
      %s249 = scalar_select %p248, %s18, 1
      %p250 = scmp.lt.s32.totalorder %s19, 0
      %s251 = scalar_select %p250, %s19, 0
      %p252 = scmp.lt.s32.totalorder %s247, 1
      %s253 = scalar_select %p252, %s247, 1
      %s254 = smul.addr %s251, 2
      %s255 = sadd.s32 %s253, %s254
      %s256 = smul.addr %s249, 2
      %s257 = sadd.s32 %s255, %s256
      %s258 = smul.addr %s257, 4
      %s259 = scalar_lea.vmem %s2, %s258
      // Predicated region
      $region29: #{layer_scale_2d.1} parent=27 // pred_check
        %p260 = pneg %p110
      $region30: #{layer_scale_2d.1} parent=27 // pred_check_branch
        %262 = sbr.rel (%p260) target = $region32
      $region31: #{layer_scale_2d.1} parent=27 // pred_region
        %s263 = smul.u32 2, %s20
      $region32: #{layer_scale_2d.1} parent=27 // pred_fallthru
        _
    $region28: #{layer_scale_2d.1} parent=5 // pred_fallthru
      _
    %p264 = scmp.le.s32.totalorder 2, %s8
    // Predicated region
    $region33: #{layer_scale_2d.1} parent=5 // pred_check
      %p265 = pneg %p264
    $region34: #{layer_scale_2d.1} parent=5 // pred_check_branch
      %267 = sbr.rel (%p265) target = $region36
    $region35: #{layer_scale_2d.1} parent=5 // pred_region
      %s268 = ssub.s32 %s8, 2
      // Predicated region
      $region37: #{layer_scale_2d.1} parent=35 // pred_check
        %p269 = pneg %p116
      $region38: #{layer_scale_2d.1} parent=35 // pred_check_branch
        %271 = sbr.rel (%p269) target = $region40
      $region39: #{layer_scale_2d.1} parent=35 // pred_region
        %s272 = smul.u32 2, %s23
        %p273 = scmp.lt.s32.totalorder %s21, 1
        %s274 = scalar_select %p273, %s21, 1
        %p275 = scmp.lt.s32.totalorder %s22, 0
        %s276 = scalar_select %p275, %s22, 0
        %p277 = scmp.lt.s32.totalorder %s272, 1
        %s278 = scalar_select %p277, %s272, 1
        %s279 = smul.addr %s276, 2
        %s280 = sadd.s32 %s278, %s279
        %s281 = smul.addr %s274, 2
        %s282 = sadd.s32 %s280, %s281
        %s283 = smul.addr %s282, 4
        %s284 = scalar_lea.vmem %s2, %s283
      $region40: #{layer_scale_2d.1} parent=35 // pred_fallthru
        _
    $region36: #{layer_scale_2d.1} parent=5 // pred_fallthru
      _
  $region6: #{layer_scale_2d.1} parent=0 // loop_footer
    %s12 = sadd.s32 1, %s8
  $region7: #{layer_scale_2d.1} parent=0 // loop_footer_branch
    %7 = sbr.rel target = $region3
  $region8: #{layer_scale_2d.1} parent=0 // loop_exit
    _

</llo_original>
